<compile_context>
chip_gen: v7x
topology: tpu7x:2x2x1
jax: 0.10.0
libtpu: 0.0.40
codegen_flags: <defaults>
</compile_context>

<pallas_src>
import jax
import jax.numpy as jnp
from jax.experimental import pallas as pl
from jax.experimental.pallas import tpu as pltpu


def bottleneck_kernel(x_ref, at_ref, c_ref, bt_ref, d_ref, o_ref):
    """Channel-major fused bottleneck block.

    x_ref : (1, C_in, t_hw)  compute dtype (tokens on the lane axis)
    at_ref: (C,  C_in)       BN1/BN2-folded conv1 weight (transposed)
    c_ref : (C,  1)   f32    folded bias
    bt_ref: (C4, C)          BN3-folded conv2 weight (transposed)
    d_ref : (C4, 1)   f32    folded bias
    o_ref : (1, C4, t_hw)    output dtype
    """
    x = x_ref[0]                                              # (C_in, t_hw)

    # bottle_in (BN1 folded) -> Slot (identity) -> BN2 folded -> ReLU
    h = jnp.dot(at_ref[...], x, preferred_element_type=jnp.float32) + c_ref[...]
    h = jnp.maximum(h, 0.0).astype(bt_ref.dtype)              # (C, t_hw)

    # bottle_out 1x1 conv with BN3 folded
    g = jnp.dot(bt_ref[...], h, preferred_element_type=jnp.float32) + d_ref[...]

    # Channel-padded residual shortcut: out[:C_in] += x, zeros elsewhere.
    # Sublane-sliced add + stores: no zero materialization, no concat.
    c_in = x.shape[0]
    c4 = g.shape[0]
    o_ref[0, :c_in, :] = (g[:c_in, :] + x.astype(jnp.float32)).astype(o_ref.dtype)
    if c4 > c_in:
        o_ref[0, c_in:, :] = g[c_in:, :].astype(o_ref.dtype)


def fold_bn(gamma, beta, mean, var, eps=1e-5):
    scale = gamma / jnp.sqrt(var + eps)
    bias = beta - mean * scale
    return scale, bias                                        # 1-D (C,)


def fold_params(p, compute_dtype):
    """Fold BN1/BN2/BN3 into the two 1x1 conv weights (channel-major form)."""
    s1, t1 = fold_bn(p["bn1_g"], p["bn1_b"], p["bn1_m"], p["bn1_v"])
    s2, t2 = fold_bn(p["bn2_g"], p["bn2_b"], p["bn2_m"], p["bn2_v"])
    s3, t3 = fold_bn(p["bn3_g"], p["bn3_b"], p["bn3_m"], p["bn3_v"])
    w1s2 = p["w1"] * s2[None, :]                              # (C_in, C)
    A = s1[:, None] * w1s2                                    # (C_in, C)
    c = t1 @ w1s2 + p["b1"] * s2 + t2                         # (C,)
    B = p["w2"] * s3[None, :]                                 # (C, C4)
    d = p["b2"] * s3 + t3                                     # (C4,)
    return (A.T.astype(compute_dtype), c[:, None].astype(jnp.float32),
            B.T.astype(compute_dtype), d[:, None].astype(jnp.float32))


def _ceil_to(v, m):
    return -(-v // m) * m


def bottleneck_block(x_nchw, params, *, t_hw=8192,
                     compute_dtype=jnp.bfloat16, out_dtype=jnp.float32):
    """x_nchw: (N, C_in, H, W). Returns (N, 4*C, H, W) in out_dtype."""
    N, C_in, H, W = x_nchw.shape
    C = params["w1"].shape[1]
    C4 = params["w2"].shape[1]
    assert C4 >= C_in, "channel-padded residual requires C*ratio >= C_in"
    HW = H * W

    # Channel-major, layout-preserving reshape (no HBM transpose pass).
    x = x_nchw.reshape(N, C_in, HW).astype(compute_dtype)

    At, c, Bt, d = fold_params(params, compute_dtype)

    # ---- token-tile sizing with (sublane, lane)-padded VMEM accounting ----
    act_bytes = jnp.dtype(compute_dtype).itemsize
    out_bytes = jnp.dtype(out_dtype).itemsize
    sub_act = 8 * (4 // act_bytes)                   # 8 (f32) / 16 (bf16)
    sub_out = 8 * (4 // out_bytes)

    try:
        vmem_cap = pltpu.get_tpu_info().vmem_capacity_bytes
    except Exception:
        vmem_cap = 64 << 20                          # v7x-safe fallback
    budget = (vmem_cap * 3) // 4                     # ~48 MiB v7x, ~96 MiB v5e/v6e

    param_vmem = 2 * ((_ceil_to(C, sub_act) * _ceil_to(C_in, 128)
                       + _ceil_to(C4, sub_act) * _ceil_to(C, 128)) * act_bytes
                      + (_ceil_to(C, 8) + _ceil_to(C4, 8)) * 128 * 4)
    per_tok = 2 * (_ceil_to(C_in, sub_act) * act_bytes
                   + _ceil_to(C4, sub_out) * out_bytes)       # dbl-buffered in+out
    t_cap = max(128, ((budget - param_vmem - (2 << 20)) // (per_tok * 128)) * 128)

    if HW <= 128:
        t_hw = HW                                    # full-dim block (always legal)
    else:
        t_hw = max(128, (min(t_hw, t_cap, HW) // 128) * 128)
    grid_hw = pl.cdiv(HW, t_hw)                      # ragged tail masked by Pallas
    if N * grid_hw < 2 and t_hw > 128:               # keep >=2 steps for v7x megacore
        t_hw = max(128, ((t_hw // 2) // 128) * 128)
        grid_hw = pl.cdiv(HW, t_hw)

    vmem_need = param_vmem + per_tok * _ceil_to(t_hw, 128) + (2 << 20)
    vmem_limit = int(min(max(vmem_need, 8 << 20), budget))

    out = pl.pallas_call(
        bottleneck_kernel,
        out_shape=jax.ShapeDtypeStruct((N, C4, HW), out_dtype),
        grid_spec=pltpu.PrefetchScalarGridSpec(
            num_scalar_prefetch=0,
            grid=(N, grid_hw),
            in_specs=[
                pl.BlockSpec((1, C_in, t_hw), lambda n, j: (n, 0, j)),  # x tile
                pl.BlockSpec((C, C_in), lambda n, j: (0, 0)),           # At (resident)
                pl.BlockSpec((C, 1), lambda n, j: (0, 0)),              # c
                pl.BlockSpec((C4, C), lambda n, j: (0, 0)),             # Bt
                pl.BlockSpec((C4, 1), lambda n, j: (0, 0)),             # d
            ],
            out_specs=pl.BlockSpec((1, C4, t_hw), lambda n, j: (n, 0, j)),
        ),
        compiler_params=pltpu.CompilerParams(
            dimension_semantics=("parallel", "parallel"),
            vmem_limit_bytes=vmem_limit),
    )(x, At, c, Bt, d)

    return out.reshape(N, C4, H, W)                  # layout-preserving split


def init_params(key, C_in, C, bottleneck_ratio=4):
    C4 = C * bottleneck_ratio
    ks = jax.random.split(key, 12)
    u = lambda k, s, lo=-0.5, hi=0.5: jax.random.uniform(k, s, jnp.float32, lo, hi)
    return {
        # bottle_in: BN(C_in) -> Conv1x1(C_in -> C)
        "bn1_g": u(ks[0], (C_in,), 0.5, 1.5),
        "bn1_b": u(ks[1], (C_in,)),
        "bn1_m": u(ks[2], (C_in,)),
        "bn1_v": u(ks[3], (C_in,), 0.5, 1.5),
        "w1": u(ks[4], (C_in, C)) * 0.2,
        "b1": u(ks[5], (C,)) * 0.1,
        # bottle_out: BN(C) -> ReLU -> Conv1x1(C -> C4)
        "bn2_g": u(ks[6], (C,), 0.5, 1.5),
        "bn2_b": u(ks[7], (C,)),
        "bn2_m": u(ks[8], (C,)),
        "bn2_v": u(ks[9], (C,), 0.5, 1.5),
        "w2": u(ks[10], (C, C4)) * 0.2,
        "b2": u(ks[11], (C4,)) * 0.1,
        # final BN(C4)
        "bn3_g": jnp.linspace(0.8, 1.2, C4, dtype=jnp.float32),
        "bn3_b": jnp.linspace(-0.1, 0.1, C4, dtype=jnp.float32),
        "bn3_m": jnp.linspace(-0.05, 0.05, C4, dtype=jnp.float32),
        "bn3_v": jnp.linspace(0.9, 1.1, C4, dtype=jnp.float32),
    }


def reference(x_nchw, p):
    """Pure-JAX unfused f32 reference of the same forward."""
    N, C_in, H, W = x_nchw.shape
    x = jnp.transpose(x_nchw, (0, 2, 3, 1)).reshape(-1, C_in)
    s1, t1 = fold_bn(p["bn1_g"], p["bn1_b"], p["bn1_m"], p["bn1_v"])
    s2, t2 = fold_bn(p["bn2_g"], p["bn2_b"], p["bn2_m"], p["bn2_v"])
    s3, t3 = fold_bn(p["bn3_g"], p["bn3_b"], p["bn3_m"], p["bn3_v"])
    h = (x * s1[None, :] + t1[None, :]) @ p["w1"] + p["b1"][None, :]
    g = jnp.maximum(h * s2[None, :] + t2[None, :], 0.0) @ p["w2"] + p["b2"][None, :]
    g = g * s3[None, :] + t3[None, :]
    C4 = p["w2"].shape[1]
    g = g + jnp.pad(x, ((0, 0), (0, C4 - C_in)))
    return jnp.transpose(g.reshape(N, H, W, C4), (0, 3, 1, 2))


if __name__ == "__main__":
    key = jax.random.PRNGKey(0)
    kx, kp = jax.random.split(key)

    N, C_in, H, W = 2, 16, 16, 16    # input (NCHW); H*W = 256 tokens per sample
    C = 8                            # bottleneck width -> output channels 4*C = 32
    x = jax.random.normal(kx, (N, C_in, H, W), jnp.float32)
    params = init_params(kp, C_in, C)
    ref = reference(x, params)

    # f32 path: tight check (BN folding only reorders float ops slightly).
    out = jax.block_until_ready(
        bottleneck_block(x, params, compute_dtype=jnp.float32))
    assert out.shape == (N, 4 * C, H, W), out.shape
    assert jnp.allclose(out, ref, atol=1e-4, rtol=1e-4), "f32 mismatch vs reference"

    # bf16 path (default; halves the x stream): looser tolerance for rounding.
    out_bf = jax.block_until_ready(bottleneck_block(x, params))
    assert out_bf.shape == (N, 4 * C, H, W), out_bf.shape
    assert jnp.allclose(out_bf, ref, atol=1e-1, rtol=1e-1), "bf16 mismatch vs reference"

    print("KERNEL_OK")
</pallas_src>

<mosaic_0001>
module attributes {stable_mosaic.version = 11 : i64} {
  func.func @bottleneck_kernel(%arg0: i32, %arg1: i32, %arg2: memref<1x16x256xf32, #tpu.memory_space<vmem>>, %arg3: memref<8x16xf32, #tpu.memory_space<vmem>>, %arg4: memref<8x1xf32, #tpu.memory_space<vmem>>, %arg5: memref<32x8xf32, #tpu.memory_space<vmem>>, %arg6: memref<32x1xf32, #tpu.memory_space<vmem>>, %arg7: memref<1x32x256xf32, #tpu.memory_space<vmem>>) attributes {dimension_semantics = [#tpu.dimension_semantics<parallel>, #tpu.dimension_semantics<parallel>], iteration_bounds = array<i64: 2, 1>, scalar_prefetch = 0 : i64, scratch_operands = 0 : i64, tpu.core_type = #tpu.core_type<tc>, window_params = [{transform_indices = @transform_0, window_bounds = array<i64: 1, 16, 256>}, {pipeline_mode = #tpu.pipeline_mode<synchronous>, transform_indices = @transform_1, window_bounds = array<i64: 8, 16>}, {pipeline_mode = #tpu.pipeline_mode<synchronous>, transform_indices = @transform_2, window_bounds = array<i64: 8, 1>}, {pipeline_mode = #tpu.pipeline_mode<synchronous>, transform_indices = @transform_3, window_bounds = array<i64: 32, 8>}, {pipeline_mode = #tpu.pipeline_mode<synchronous>, transform_indices = @transform_4, window_bounds = array<i64: 32, 1>}, {transform_indices = @transform_5, window_bounds = array<i64: 1, 32, 256>}]} {
    %c0 = arith.constant 0 : index
    %c0_0 = arith.constant 0 : index
    %c0_1 = arith.constant 0 : index
    %0 = vector.load %arg2[%c0, %c0_0, %c0_1] : memref<1x16x256xf32, #tpu.memory_space<vmem>>, vector<1x16x256xf32>
    %1 = vector.shape_cast %0 : vector<1x16x256xf32> to vector<16x256xf32>
    %c0_2 = arith.constant 0 : index
    %c0_3 = arith.constant 0 : index
    %2 = vector.load %arg3[%c0_2, %c0_3] : memref<8x16xf32, #tpu.memory_space<vmem>>, vector<8x16xf32>
    %cst = arith.constant dense<0.000000e+00> : vector<8x256xf32>
    %3 = tpu.matmul %2, %1, %cst {dimension_numbers = #tpu.dot_dimension_numbers<[1], [0], [0], [1], [0, 0, 1, 1], [], []>} : vector<8x16xf32>, vector<16x256xf32>, vector<8x256xf32> -> vector<8x256xf32>
    %c0_4 = arith.constant 0 : index
    %c0_5 = arith.constant 0 : index
    %4 = vector.load %arg4[%c0_4, %c0_5] : memref<8x1xf32, #tpu.memory_space<vmem>>, vector<8x1xf32>
    %5 = vector.broadcast %4 : vector<8x1xf32> to vector<8x256xf32>
    %6 = arith.addf %3, %5 : vector<8x256xf32>
    %cst_6 = arith.constant 0.000000e+00 : f32
    %7 = vector.broadcast %cst_6 : f32 to vector<8x256xf32>
    %8 = arith.maximumf %6, %7 : vector<8x256xf32>
    %c0_7 = arith.constant 0 : index
    %c0_8 = arith.constant 0 : index
    %9 = vector.load %arg5[%c0_7, %c0_8] : memref<32x8xf32, #tpu.memory_space<vmem>>, vector<32x8xf32>
    %cst_9 = arith.constant dense<0.000000e+00> : vector<32x256xf32>
    %10 = tpu.matmul %9, %8, %cst_9 {dimension_numbers = #tpu.dot_dimension_numbers<[1], [0], [0], [1], [0, 0, 1, 1], [], []>} : vector<32x8xf32>, vector<8x256xf32>, vector<32x256xf32> -> vector<32x256xf32>
    %c0_10 = arith.constant 0 : index
    %c0_11 = arith.constant 0 : index
    %11 = vector.load %arg6[%c0_10, %c0_11] : memref<32x1xf32, #tpu.memory_space<vmem>>, vector<32x1xf32>
    %12 = vector.broadcast %11 : vector<32x1xf32> to vector<32x256xf32>
    %13 = arith.addf %10, %12 : vector<32x256xf32>
    %14 = vector.extract_strided_slice %13 {offsets = [0, 0], sizes = [16, 256], strides = [1, 1]} : vector<32x256xf32> to vector<16x256xf32>
    %15 = arith.addf %14, %1 : vector<16x256xf32>
    %c0_12 = arith.constant 0 : index
    %c0_13 = arith.constant 0 : index
    %c0_14 = arith.constant 0 : index
    %16 = vector.load %arg7[%c0_12, %c0_13, %c0_14] : memref<1x32x256xf32, #tpu.memory_space<vmem>>, vector<1x16x256xf32>
    %17 = vector.shape_cast %16 : vector<1x16x256xf32> to vector<16x256xf32>
    %18 = vector.shape_cast %15 : vector<16x256xf32> to vector<1x16x256xf32>
    tpu.vector_store %arg7[%c0_12, %c0_13, %c0_14], %18 {strides = array<i32>} : memref<1x32x256xf32, #tpu.memory_space<vmem>>, vector<1x16x256xf32>,
    %19 = vector.extract_strided_slice %13 {offsets = [16, 0], sizes = [16, 256], strides = [1, 1]} : vector<32x256xf32> to vector<16x256xf32>
    %c0_15 = arith.constant 0 : index
    %c16 = arith.constant 16 : index
    %c0_16 = arith.constant 0 : index
    %20 = vector.load %arg7[%c0_15, %c16, %c0_16] : memref<1x32x256xf32, #tpu.memory_space<vmem>>, vector<1x16x256xf32>
    %21 = vector.shape_cast %20 : vector<1x16x256xf32> to vector<16x256xf32>
    %22 = vector.shape_cast %19 : vector<16x256xf32> to vector<1x16x256xf32>
    tpu.vector_store %arg7[%c0_15, %c16, %c0_16], %22 {strides = array<i32>} : memref<1x32x256xf32, #tpu.memory_space<vmem>>, vector<1x16x256xf32>,
    return
  }
  func.func @transform_0(%arg0: i32, %arg1: i32) -> (i32, i32, i32) {
    %c0_i32 = arith.constant 0 : i32
    %c0_i32_0 = arith.constant 0 : i32
    return %arg0, %c0_i32, %arg1 : i32, i32, i32
  }
  func.func @transform_1(%arg0: i32, %arg1: i32) -> (i32, i32) {
    %c0_i32 = arith.constant 0 : i32
    %c0_i32_0 = arith.constant 0 : i32
    %c0_i32_1 = arith.constant 0 : i32
    return %c0_i32, %c0_i32_0 : i32, i32
  }
  func.func @transform_2(%arg0: i32, %arg1: i32) -> (i32, i32) {
    %c0_i32 = arith.constant 0 : i32
    %c0_i32_0 = arith.constant 0 : i32
    %c0_i32_1 = arith.constant 0 : i32
    return %c0_i32, %c0_i32_0 : i32, i32
  }
  func.func @transform_3(%arg0: i32, %arg1: i32) -> (i32, i32) {
    %c0_i32 = arith.constant 0 : i32
    %c0_i32_0 = arith.constant 0 : i32
    %c0_i32_1 = arith.constant 0 : i32
    return %c0_i32, %c0_i32_0 : i32, i32
  }
  func.func @transform_4(%arg0: i32, %arg1: i32) -> (i32, i32) {
    %c0_i32 = arith.constant 0 : i32
    %c0_i32_0 = arith.constant 0 : i32
    %c0_i32_1 = arith.constant 0 : i32
    return %c0_i32, %c0_i32_0 : i32, i32
  }
  func.func @transform_5(%arg0: i32, %arg1: i32) -> (i32, i32, i32) {
    %c0_i32 = arith.constant 0 : i32
    %c0_i32_0 = arith.constant 0 : i32
    return %arg0, %c0_i32, %arg1 : i32, i32, i32
  }
}

</mosaic_0001>

<llo_original>
// kernel: tpu_custom_call.1
$region0: #{tpu_custom_call.1}
  #allocation0 [shape = 'u32[]', space=smem, size = 0x4, offset = 0x4, fixed_abs, tag = 'smem constant byte address 0x4 - core index']
  #allocation1 [shape = 'u32[144,128]{1,0:T(1,128)}', space=vmem, size = 0x12000, scoped, tag = 'internal scratch']
  %s0 = inlined_call_operand.vmem [shape: f32[2,16,256], index: 0, kind: input, shape index: {}]
  %s1 = inlined_call_operand.vmem [shape: f32[8,16], index: 1, kind: input, shape index: {}]
  %s2 = inlined_call_operand.vmem [shape: f32[8,1], index: 2, kind: input, shape index: {}]
  %s3 = inlined_call_operand.vmem [shape: f32[32,8], index: 3, kind: input, shape index: {}]
  %s4 = inlined_call_operand.vmem [shape: f32[32,1], index: 4, kind: input, shape index: {}]
  %s5 = inlined_call_operand.hbm [shape: f32[2,32,256], index: 5, kind: output, shape index: {}]
  %s6 = sld [smem:[#allocation0]]
  $region53: #{tpu_custom_call.1} parent=0
    _
  %s8 = ssub.s32 1, %s6
  %s9 = scalar_select 0, %s8, %s6
  $region1: #{tpu_custom_call.1} parent=0
    #allocation2 [shape = 'u8[65536]{0}', space=vmem, size = 0x10000, scoped, tag = 'output window, operand 0']
    #allocation3 [shape = 's32[2]{0}', space=sflag, size = 0x8, scoped, tag = 'scoped memory for tpu_custom_call.1']
    %10 = vsyncpa [#allocation3], 0
    %s11 = scalar_lea.sflag [#allocation3], 1
    %12 = vsyncpa %s11, 0
    loop: start=0, step=1, limit=4
    $region2: #{tpu_custom_call.1} parent=1 // loop_pre_header
      _
    $region3: #{tpu_custom_call.1} parent=1 // loop_header
      %s14 = sphi 0, %s18
      %p15 = scmp.ge.s32.totalorder %s14, 4
      %s21 = sphi 0, %s33
      %s22 = sphi 0, %s29
      %s23 = sphi 0, %s21
      %s24 = sphi 0, %s22
      %s25 = sphi 0, %s23
      %s26 = sphi 0, %s24
      %s38 = sphi 0, %s40
      %s41 = sphi 0, %s38
      %s42 = sphi 0, %s41
      %s58 = sphi 0, %s42
      %s62 = sphi 0, %s62
      %s64 = sphi 0, %s62
      %s65 = sphi 0, %s64
      %s79 = sphi 0, %s65
      %s83 = sphi 0, %s83
      %s85 = sphi 0, %s83
      %s86 = sphi 0, %s85
      %s100 = sphi 0, %s86
      %s104 = sphi 0, %s104
      %s106 = sphi 0, %s104
      %s107 = sphi 0, %s106
      %s121 = sphi 0, %s107
      %s125 = sphi 0, %s125
      %s127 = sphi 0, %s125
      %s128 = sphi 0, %s127
      %s142 = sphi 0, %s128
      %s150 = sphi 0, %s152
      %s153 = sphi 0, %s150
      %s154 = sphi 0, %s153
      %s170 = sphi 0, %s154
    $region4: #{tpu_custom_call.1} parent=1 // loop_header_branch
      %17 = sbr.rel (%p15) target = $region8
    $region5: #{tpu_custom_call.1} parent=1 // loop_body
      %s19 = ssub.s32 %s14, 1
      %s20 = ssub.s32 %s14, 2
      %s27 = sadd.s32 1, %s22
      %p28 = scmp.ge.s32.totalorder %s27, 1
      %s29 = scalar_select %p28, 0, %s27
      %s30 = sadd.s32 1, %s21
      %s31 = scalar_select %p28, %s30, %s21
      %p32 = scmp.ge.s32.totalorder %s31, 2
      %s33 = scalar_select %p32, 0, %s31
      %s34 = ssub.s32 %s21, %s33
      %s35 = ssub.s32 %s22, %s29
      %s36 = sor.u32 %s34, %s35
      %p37 = scmp.eq.s32.totalorder %s36, 0
      %s39 = sadd.s32 %s38, 1
      %s40 = scalar_select %p37, %s38, %s39
      %p43 = pneg %p37
      %p44 = scmp.eq.s32.totalorder %s14, 1
      %p45 = por %p43, %p44
      %p46 = scmp.ne.s32.totalorder %s38, %s41
      %p47 = scmp.eq.s32.totalorder %s14, 0
      %p48 = por %p46, %p47
      %p49 = scmp.ne.s32.totalorder %s38, %s41
      %p50 = scmp.eq.s32.totalorder %s19, 1
      %p51 = por %p49, %p50
      %p52 = scmp.ne.s32.totalorder %s41, %s42
      %p53 = scmp.eq.s32.totalorder %s19, 0
      %p54 = por %p52, %p53
      %p55 = scmp.ne.s32.totalorder %s41, %s42
      %p56 = scmp.eq.s32.totalorder %s20, 1
      %p57 = por %p55, %p56
      %p59 = scmp.ne.s32.totalorder %s42, %s58
      %p60 = scmp.eq.s32.totalorder %s20, 0
      %p61 = por %p59, %p60
      %s63 = sadd.s32 %s62, 1
      %p66 = scmp.eq.s32.totalorder %s14, 1
      %p67 = scmp.ne.s32.totalorder %s62, %s64
      %p68 = scmp.eq.s32.totalorder %s14, 0
      %p69 = por %p67, %p68
      %p70 = scmp.ne.s32.totalorder %s62, %s64
      %p71 = scmp.eq.s32.totalorder %s19, 1
      %p72 = por %p70, %p71
      %p73 = scmp.ne.s32.totalorder %s64, %s65
      %p74 = scmp.eq.s32.totalorder %s19, 0
      %p75 = por %p73, %p74
      %p76 = scmp.ne.s32.totalorder %s64, %s65
      %p77 = scmp.eq.s32.totalorder %s20, 1
      %p78 = por %p76, %p77
      %p80 = scmp.ne.s32.totalorder %s65, %s79
      %p81 = scmp.eq.s32.totalorder %s20, 0
      %p82 = por %p80, %p81
      %s84 = sadd.s32 %s83, 1
      %p87 = scmp.eq.s32.totalorder %s14, 1
      %p88 = scmp.ne.s32.totalorder %s83, %s85
      %p89 = scmp.eq.s32.totalorder %s14, 0
      %p90 = por %p88, %p89
      %p91 = scmp.ne.s32.totalorder %s83, %s85
      %p92 = scmp.eq.s32.totalorder %s19, 1
      %p93 = por %p91, %p92
      %p94 = scmp.ne.s32.totalorder %s85, %s86
      %p95 = scmp.eq.s32.totalorder %s19, 0
      %p96 = por %p94, %p95
      %p97 = scmp.ne.s32.totalorder %s85, %s86
      %p98 = scmp.eq.s32.totalorder %s20, 1
      %p99 = por %p97, %p98
      %p101 = scmp.ne.s32.totalorder %s86, %s100
      %p102 = scmp.eq.s32.totalorder %s20, 0
      %p103 = por %p101, %p102
      %s105 = sadd.s32 %s104, 1
      %p108 = scmp.eq.s32.totalorder %s14, 1
      %p109 = scmp.ne.s32.totalorder %s104, %s106
      %p110 = scmp.eq.s32.totalorder %s14, 0
      %p111 = por %p109, %p110
      %p112 = scmp.ne.s32.totalorder %s104, %s106
      %p113 = scmp.eq.s32.totalorder %s19, 1
      %p114 = por %p112, %p113
      %p115 = scmp.ne.s32.totalorder %s106, %s107
      %p116 = scmp.eq.s32.totalorder %s19, 0
      %p117 = por %p115, %p116
      %p118 = scmp.ne.s32.totalorder %s106, %s107
      %p119 = scmp.eq.s32.totalorder %s20, 1
      %p120 = por %p118, %p119
      %p122 = scmp.ne.s32.totalorder %s107, %s121
      %p123 = scmp.eq.s32.totalorder %s20, 0
      %p124 = por %p122, %p123
      %s126 = sadd.s32 %s125, 1
      %p129 = scmp.eq.s32.totalorder %s14, 1
      %p130 = scmp.ne.s32.totalorder %s125, %s127
      %p131 = scmp.eq.s32.totalorder %s14, 0
      %p132 = por %p130, %p131
      %p133 = scmp.ne.s32.totalorder %s125, %s127
      %p134 = scmp.eq.s32.totalorder %s19, 1
      %p135 = por %p133, %p134
      %p136 = scmp.ne.s32.totalorder %s127, %s128
      %p137 = scmp.eq.s32.totalorder %s19, 0
      %p138 = por %p136, %p137
      %p139 = scmp.ne.s32.totalorder %s127, %s128
      %p140 = scmp.eq.s32.totalorder %s20, 1
      %p141 = por %p139, %p140
      %p143 = scmp.ne.s32.totalorder %s128, %s142
      %p144 = scmp.eq.s32.totalorder %s20, 0
      %p145 = por %p143, %p144
      %s146 = ssub.s32 %s21, %s33
      %s147 = ssub.s32 %s22, %s29
      %s148 = sor.u32 %s146, %s147
      %p149 = scmp.eq.s32.totalorder %s148, 0
      %s151 = sadd.s32 %s150, 1
      %s152 = scalar_select %p149, %s150, %s151
      %p155 = pneg %p149
      %p156 = scmp.eq.s32.totalorder %s14, 1
      %p157 = por %p155, %p156
      %p158 = scmp.ne.s32.totalorder %s150, %s153
      %p159 = scmp.eq.s32.totalorder %s14, 0
      %p160 = por %p158, %p159
      %p161 = scmp.ne.s32.totalorder %s150, %s153
      %p162 = scmp.eq.s32.totalorder %s19, 1
      %p163 = por %p161, %p162
      %p164 = scmp.ne.s32.totalorder %s153, %s154
      %p165 = scmp.eq.s32.totalorder %s19, 0
      %p166 = por %p164, %p165
      %p167 = scmp.ne.s32.totalorder %s153, %s154
      %p168 = scmp.eq.s32.totalorder %s20, 1
      %p169 = por %p167, %p168
      %p171 = scmp.ne.s32.totalorder %s154, %s170
      %p172 = scmp.eq.s32.totalorder %s20, 0
      %p173 = por %p171, %p172
      %p174 = scmp.le.s32.totalorder 1, %s14
      %p175 = scmp.lt.s32.totalorder %s14, 3
      %p176 = pnand %p174, %p175
      %p177 = pneg %p176
      // Predicated region
      $region9: #{tpu_custom_call.1} parent=5 // pred_check
        _
      $region10: #{tpu_custom_call.1} parent=5 // pred_check_branch
        %179 = sbr.rel (%p176) target = $region12
      $region11: #{tpu_custom_call.1} parent=5 // pred_region
        %s180 = ssub.s32 %s14, 1
        // Predicated region
        $region13: #{tpu_custom_call.1} parent=11 // pred_check
          %p181 = pneg %p75
        $region14: #{tpu_custom_call.1} parent=11 // pred_check_branch
          %183 = sbr.rel (%p181) target = $region16
        $region15: #{tpu_custom_call.1} parent=11 // pred_region
          _
        $region16: #{tpu_custom_call.1} parent=11 // pred_fallthru
          _
        // Predicated region
        $region17: #{tpu_custom_call.1} parent=11 // pred_check
          %p184 = pneg %p96
        $region18: #{tpu_custom_call.1} parent=11 // pred_check_branch
          %186 = sbr.rel (%p184) target = $region20
        $region19: #{tpu_custom_call.1} parent=11 // pred_region
          _
        $region20: #{tpu_custom_call.1} parent=11 // pred_fallthru
          _
        // Predicated region
        $region21: #{tpu_custom_call.1} parent=11 // pred_check
          %p187 = pneg %p117
        $region22: #{tpu_custom_call.1} parent=11 // pred_check_branch
          %189 = sbr.rel (%p187) target = $region24
        $region23: #{tpu_custom_call.1} parent=11 // pred_region
          _
        $region24: #{tpu_custom_call.1} parent=11 // pred_fallthru
          _
        // Predicated region
        $region25: #{tpu_custom_call.1} parent=11 // pred_check
          %p190 = pneg %p138
        $region26: #{tpu_custom_call.1} parent=11 // pred_check_branch
          %192 = sbr.rel (%p190) target = $region28
        $region27: #{tpu_custom_call.1} parent=11 // pred_region
          _
        $region28: #{tpu_custom_call.1} parent=11 // pred_fallthru
          _
      $region12: #{tpu_custom_call.1} parent=5 // pred_fallthru
        _
      %p193 = scmp.lt.s32.totalorder %s14, 2
      // Predicated region
      $region29: #{tpu_custom_call.1} parent=5 // pred_check
        %p194 = pneg %p193
      $region30: #{tpu_custom_call.1} parent=5 // pred_check_branch
        %196 = sbr.rel (%p194) target = $region32
      $region31: #{tpu_custom_call.1} parent=5 // pred_region
        // Predicated region
        $region33: #{tpu_custom_call.1} parent=31 // pred_check
          %p197 = pneg %p48
        $region34: #{tpu_custom_call.1} parent=31 // pred_check_branch
          %199 = sbr.rel (%p197) target = $region36
        $region35: #{tpu_custom_call.1} parent=31 // pred_region
          %s200 = smul.u32 2, %s22
          %p201 = scmp.lt.s32.totalorder %s21, 1
          %s202 = scalar_select %p201, %s21, 1
          %p203 = scmp.lt.s32.totalorder %s200, 1
          %s204 = scalar_select %p203, %s200, 1
          %s205 = smul.addr %s202, 4
          %s206 = sadd.s32 %s204, %s205
          %s207 = smul.addr %s206, 8
          %s208 = scalar_lea.vmem %s0, %s207
          %s209 = smul.u32 2, %s22
        $region36: #{tpu_custom_call.1} parent=31 // pred_fallthru
          _
      $region32: #{tpu_custom_call.1} parent=5 // pred_fallthru
        _
      %p210 = scmp.le.s32.totalorder 1, %s14
      %p211 = scmp.lt.s32.totalorder %s14, 3
      %p212 = pnand %p210, %p211
      %p213 = pneg %p212
      // Predicated region
      $region37: #{tpu_custom_call.1} parent=5 // pred_check
        _
      $region38: #{tpu_custom_call.1} parent=5 // pred_check_branch
        %215 = sbr.rel (%p212) target = $region40
      $region39: #{tpu_custom_call.1} parent=5 // pred_region
        %s216 = ssub.s32 %s14, 1
        %s217 = smul.u32 2, %s24
        %p218 = scmp.lt.s32.totalorder %s23, 1
        %s219 = scalar_select %p218, %s23, 1
        %p220 = scmp.lt.s32.totalorder %s217, 1
        %s221 = scalar_select %p220, %s217, 1
        %s222 = smul.addr %s219, 4
        %s223 = sadd.s32 %s221, %s222
        %s224 = smul.addr %s223, 8
        %s225 = scalar_lea.vmem %s0, %s224
        %p226 = pneg %p54
        %p227 = pneg %p51
        %p228 = pneg %p75
        %p229 = pneg %p72
        %p230 = pneg %p96
        %p231 = pneg %p93
        %p232 = pneg %p117
        %p233 = pneg %p114
        %p234 = pneg %p138
        %p235 = pneg %p135
        %p236 = pneg %p166
        %p237 = pneg %p163
        %s238 = sand.u32 %s153, 1
        %s239 = scalar_lea.sflag [#allocation3], %s238
        %s240 = sand.u32 %s153, 1
        %s241 = smul.addr %s240, 64
        %s242 = scalar_lea.vmem [#allocation2], %s241
        %s243 = smul.u32 2, %s24
        %p244 = scmp.lt.s32.totalorder %s23, 1
        %s245 = scalar_select %p244, %s23, 1
        %p246 = scmp.lt.s32.totalorder %s243, 1
        %s247 = scalar_select %p246, %s243, 1
        %s248 = smul.addr %s245, 4
        %s249 = sadd.s32 %s247, %s248
        %s250 = smul.addr %s249, 8
        %s251 = scalar_lea.vmem %s0, %s250
        %s252 = smul.u32 2, %s24
        %s253 = smul.u32 2, %s24
        %v254 = vld [vmem:[%s251] sm:$0xff]
        %v255 = vld [vmem:[%s251 + $0x8] sm:$0xff]
        %v256 = vld [vmem:[%s251 + $0x10] sm:$0xff]
        %v257 = vld [vmem:[%s251 + $0x18] sm:$0xff]
        %v258 = vld [vmem:[%s1] sm:$0xff]
        %v259 = vld [vmem:[%s2] sm:$0xff]
        %261 = vset.pattern.permute.xlu0 0
        %262 = vperm.xlu0 %261, %v259
        %v263 = vpop.permute.xlu0 %262
        %vm265 = vcmask 130048
        %v267 = vsel %vm265, %v258, 0
        %269 = vmatprep.subr.mxu0 %v255
        %270 = vmatpush1.msra.mxu0 %v254
        %271 = vmatprep.subr.mxu0 %v257
        %272 = vmatpush1.msra.mxu0 %v256
        %273 = vmatprep.subr.mxu0 0.0
        %274 = vmatpush1.msra.mxu0 0.0
        %275 = vmatprep.subr.mxu0 0.0
        %276 = vmatpush1.msra.mxu0 0.0
        %277 = vmatprep.subr.mxu0 0.0
        %278 = vmatpush1.msra.mxu0 0.0
        %279 = vmatprep.subr.mxu0 0.0
        %280 = vmatpush1.msra.mxu0 0.0
        %281 = vmatprep.subr.mxu0 0.0
        %282 = vmatpush1.msra.mxu0 0.0
        %283 = vmatprep.subr.mxu0 0.0
        %284 = vmatpush1.msra.mxu0 0.0
        %285 = vmatprep.subr.mxu0 0.0
        %286 = vmatpush1.msra.mxu0 0.0
        %287 = vmatprep.subr.mxu0 0.0
        %288 = vmatpush1.msra.mxu0 0.0
        %289 = vmatprep.subr.mxu0 0.0
        %290 = vmatpush1.msra.mxu0 0.0
        %291 = vmatprep.subr.mxu0 0.0
        %292 = vmatpush1.msra.mxu0 0.0
        %293 = vmatprep.subr.mxu0 0.0
        %294 = vmatpush1.msra.mxu0 0.0
        %295 = vmatprep.subr.mxu0 0.0
        %296 = vmatpush1.msra.mxu0 0.0
        %297 = vmatprep.subr.mxu0 0.0
        %298 = vmatpush1.msra.mxu0 0.0
        %299 = vmatprep.subr.mxu0 0.0
        %300 = vmatpush1.msra.mxu0 0.0
        %301 = vmatprep.subr.mxu0 0.0
        %302 = vmatpush1.msra.mxu0 0.0
        %303 = vmatprep.subr.mxu0 0.0
        %304 = vmatpush1.msra.mxu0 0.0
        %305 = vmatprep.subr.mxu0 0.0
        %306 = vmatpush1.msra.mxu0 0.0
        %307 = vmatprep.subr.mxu0 0.0
        %308 = vmatpush1.msra.mxu0 0.0
        %309 = vmatprep.subr.mxu0 0.0
        %310 = vmatpush1.msra.mxu0 0.0
        %311 = vmatprep.subr.mxu0 0.0
        %312 = vmatpush1.msra.mxu0 0.0
        %313 = vmatprep.subr.mxu0 0.0
        %314 = vmatpush1.msra.mxu0 0.0
        %315 = vmatprep.subr.mxu0 0.0
        %316 = vmatpush1.msra.mxu0 0.0
        %317 = vmatprep.subr.mxu0 0.0
        %318 = vmatpush1.msra.mxu0 0.0
        %319 = vmatprep.subr.mxu0 0.0
        %320 = vmatpush1.msra.mxu0 0.0
        %321 = vmatprep.subr.mxu0 0.0
        %322 = vmatpush1.msra.mxu0 0.0
        %323 = vmatprep.subr.mxu0 0.0
        %324 = vmatpush1.msra.mxu0 0.0
        %325 = vmatprep.subr.mxu0 0.0
        %326 = vmatpush1.msra.mxu0 0.0
        %327 = vmatprep.subr.mxu0 0.0
        %328 = vmatpush1.msra.mxu0 0.0
        %329 = vmatprep.subr.mxu0 0.0
        %330 = vmatpush1.msra.mxu0 0.0
        %331 = vmatprep.subr.mxu0 0.0
        %332 = vmatpush1.msra.mxu0 0.0
        %333 = vmatprep.mubr.f32.mxu0 0.0
        %334 = vmatmul.mubr.f32.gmra.mrb[0].mxu0 %v267
        %v335 = vpop.f32.mrb[0].mxu0
        %v336 = vadd.f32 %v263, %v335
        %v337 = vpop.f32.mrb[0].mxu0
        %v338 = vadd.f32 %v263, %v337
        %339 = vdwg.mxu0
        %v340 = vmax.f32 %v336, 0.0
        %v341 = vmax.f32 %v338, 0.0
        %v342 = vld [vmem:[%s3] sm:$0xff]
        %v343 = vld [vmem:[%s3 + $0x8] sm:$0xff]
        %v344 = vld [vmem:[%s3 + $0x10] sm:$0xff]
        %v345 = vld [vmem:[%s3 + $0x18] sm:$0xff]
        %v346 = vld [vmem:[%s4] sm:$0xff]
        %v347 = vld [vmem:[%s4 + $0x8] sm:$0xff]
        %v348 = vld [vmem:[%s4 + $0x10] sm:$0xff]
        %v349 = vld [vmem:[%s4 + $0x18] sm:$0xff]
        %351 = vset.pattern.permute.xlu0 0
        %352 = vperm.xlu0 %351, %v346
        %v353 = vpop.permute.xlu0 %352
        %356 = vset.pattern.permute.xlu0 0
        %357 = vperm.xlu0 %356, %v347
        %v358 = vpop.permute.xlu0 %357
        %361 = vset.pattern.permute.xlu0 0
        %362 = vperm.xlu0 %361, %v348
        %v363 = vpop.permute.xlu0 %362
        %366 = vset.pattern.permute.xlu0 0
        %367 = vperm.xlu0 %366, %v349
        %v368 = vpop.permute.xlu0 %367
        %vm370 = vcmask 64512
        %v372 = vsel %vm370, %v342, 0
        %v375 = vsel %vm370, %v343, 0
        %v378 = vsel %vm370, %v344, 0
        %v381 = vsel %vm370, %v345, 0
        %383 = vmatprep.subr.mxu0 %v341
        %384 = vmatpush1.msra.mxu0 %v340
        %385 = vmatprep.subr.mxu0 0.0
        %386 = vmatpush1.msra.mxu0 0.0
        %387 = vmatprep.subr.mxu0 0.0
        %388 = vmatpush1.msra.mxu0 0.0
        %389 = vmatprep.subr.mxu0 0.0
        %390 = vmatpush1.msra.mxu0 0.0
        %391 = vmatprep.subr.mxu0 0.0
        %392 = vmatpush1.msra.mxu0 0.0
        %393 = vmatprep.subr.mxu0 0.0
        %394 = vmatpush1.msra.mxu0 0.0
        %395 = vmatprep.subr.mxu0 0.0
        %396 = vmatpush1.msra.mxu0 0.0
        %397 = vmatprep.subr.mxu0 0.0
        %398 = vmatpush1.msra.mxu0 0.0
        %399 = vmatprep.subr.mxu0 0.0
        %400 = vmatpush1.msra.mxu0 0.0
        %401 = vmatprep.subr.mxu0 0.0
        %402 = vmatpush1.msra.mxu0 0.0
        %403 = vmatprep.subr.mxu0 0.0
        %404 = vmatpush1.msra.mxu0 0.0
        %405 = vmatprep.subr.mxu0 0.0
        %406 = vmatpush1.msra.mxu0 0.0
        %407 = vmatprep.subr.mxu0 0.0
        %408 = vmatpush1.msra.mxu0 0.0
        %409 = vmatprep.subr.mxu0 0.0
        %410 = vmatpush1.msra.mxu0 0.0
        %411 = vmatprep.subr.mxu0 0.0
        %412 = vmatpush1.msra.mxu0 0.0
        %413 = vmatprep.subr.mxu0 0.0
        %414 = vmatpush1.msra.mxu0 0.0
        %415 = vmatprep.subr.mxu0 0.0
        %416 = vmatpush1.msra.mxu0 0.0
        %417 = vmatprep.subr.mxu0 0.0
        %418 = vmatpush1.msra.mxu0 0.0
        %419 = vmatprep.subr.mxu0 0.0
        %420 = vmatpush1.msra.mxu0 0.0
        %421 = vmatprep.subr.mxu0 0.0
        %422 = vmatpush1.msra.mxu0 0.0
        %423 = vmatprep.subr.mxu0 0.0
        %424 = vmatpush1.msra.mxu0 0.0
        %425 = vmatprep.subr.mxu0 0.0
        %426 = vmatpush1.msra.mxu0 0.0
        %427 = vmatprep.subr.mxu0 0.0
        %428 = vmatpush1.msra.mxu0 0.0
        %429 = vmatprep.subr.mxu0 0.0
        %430 = vmatpush1.msra.mxu0 0.0
        %431 = vmatprep.subr.mxu0 0.0
        %432 = vmatpush1.msra.mxu0 0.0
        %433 = vmatprep.subr.mxu0 0.0
        %434 = vmatpush1.msra.mxu0 0.0
        %435 = vmatprep.subr.mxu0 0.0
        %436 = vmatpush1.msra.mxu0 0.0
        %437 = vmatprep.subr.mxu0 0.0
        %438 = vmatpush1.msra.mxu0 0.0
        %439 = vmatprep.subr.mxu0 0.0
        %440 = vmatpush1.msra.mxu0 0.0
        %441 = vmatprep.subr.mxu0 0.0
        %442 = vmatpush1.msra.mxu0 0.0
        %443 = vmatprep.subr.mxu0 0.0
        %444 = vmatpush1.msra.mxu0 0.0
        %445 = vmatprep.subr.mxu0 0.0
        %446 = vmatpush1.msra.mxu0 0.0
        %447 = vmatprep.mubr.f32.mxu0 0.0
        %448 = vmatmul.mubr.f32.gmra.mrb[0].mxu0 %v372
        %v449 = vpop.f32.mrb[0].mxu0
        %v450 = vadd.f32 %v353, %v449
        %v451 = vpop.f32.mrb[0].mxu0
        %v452 = vadd.f32 %v353, %v451
        %453 = vmatprep.mubr.f32.mxu0 0.0
        %454 = vmatmul.mubr.f32.gmra.mrb[0].mxu0 %v375
        %v455 = vpop.f32.mrb[0].mxu0
        %v456 = vadd.f32 %v358, %v455
        %v457 = vpop.f32.mrb[0].mxu0
        %v458 = vadd.f32 %v358, %v457
        %459 = vmatprep.mubr.f32.mxu0 0.0
        %460 = vmatmul.mubr.f32.gmra.mrb[0].mxu0 %v378
        %v461 = vpop.f32.mrb[0].mxu0
        %v462 = vadd.f32 %v363, %v461
        %v463 = vpop.f32.mrb[0].mxu0
        %v464 = vadd.f32 %v363, %v463
        %465 = vmatprep.mubr.f32.mxu0 0.0
        %466 = vmatmul.mubr.f32.gmra.mrb[0].mxu0 %v381
        %v467 = vpop.f32.mrb[0].mxu0
        %v468 = vadd.f32 %v368, %v467
        %v469 = vpop.f32.mrb[0].mxu0
        %v470 = vadd.f32 %v368, %v469
        %471 = vdwg.mxu0
        %v472 = vadd.f32 %v450, %v254
        %v473 = vadd.f32 %v452, %v255
        %v474 = vadd.f32 %v456, %v256
        %v475 = vadd.f32 %v458, %v257
        %476 = vst [vmem:[%s242] sm:$0xff] %v472
        %477 = vst [vmem:[%s242 + $0x8] sm:$0xff] %v473
        %478 = vst [vmem:[%s242 + $0x10] sm:$0xff] %v474
        %479 = vst [vmem:[%s242 + $0x18] sm:$0xff] %v475
        %480 = vst [vmem:[%s242 + $0x20] sm:$0xff] %v462
        %481 = vst [vmem:[%s242 + $0x28] sm:$0xff] %v464
        %482 = vst [vmem:[%s242 + $0x30] sm:$0xff] %v468
        %483 = vst [vmem:[%s242 + $0x38] sm:$0xff] %v470
        %s484 = sand.u32 %s153, 1
        %s485 = scalar_lea.sflag [#allocation3], %s484
        %s486 = sand.u32 %s153, 1
        %s487 = smul.addr %s486, 64
        %s488 = scalar_lea.vmem [#allocation2], %s487
        // Predicated region
        $region41: #{tpu_custom_call.1} parent=39 // pred_check
          %p489 = pneg %p163
        $region42: #{tpu_custom_call.1} parent=39 // pred_check_branch
          %491 = sbr.rel (%p489) target = $region44
        $region43: #{tpu_custom_call.1} parent=39 // pred_region
          %s492 = smul.u32 2, %s24
          %s494 = ssub.s32 1024, 1024
          %495 = vsyncadd %s485, %s494
          %s496 = smul.addr %s23, 8
          %s497 = sadd.s32 %s492, %s496
          %s498 = smul.addr %s497, 128
          %s499 = scalar_lea.hbm %s5, %s498
          %s500 = sshll.u32 %s488, 4
          %s501 = int_to_ptr.vmem [resolvable:$true] %s500
          %506 = dma.vmem_to_hbm [thread:$0]  %s501, 1024, %s499, %s485, 256, 256, 16
        $region44: #{tpu_custom_call.1} parent=39 // pred_fallthru
          _
      $region40: #{tpu_custom_call.1} parent=5 // pred_fallthru
        _
      %p507 = scmp.le.s32.totalorder 2, %s14
      // Predicated region
      $region45: #{tpu_custom_call.1} parent=5 // pred_check
        %p508 = pneg %p507
      $region46: #{tpu_custom_call.1} parent=5 // pred_check_branch
        %510 = sbr.rel (%p508) target = $region48
      $region47: #{tpu_custom_call.1} parent=5 // pred_region
        %s511 = ssub.s32 %s14, 2
        // Predicated region
        $region49: #{tpu_custom_call.1} parent=47 // pred_check
          %p512 = pneg %p169
        $region50: #{tpu_custom_call.1} parent=47 // pred_check_branch
          %514 = sbr.rel (%p512) target = $region52
        $region51: #{tpu_custom_call.1} parent=47 // pred_region
          %s515 = sand.u32 %s154, 1
          %s516 = scalar_lea.sflag [#allocation3], %s515
          %s517 = sand.u32 %s154, 1
          %s518 = smul.addr %s517, 64
          %s519 = scalar_lea.vmem [#allocation2], %s518
          %520 = dma.done %s516, 1024
        $region52: #{tpu_custom_call.1} parent=47 // pred_fallthru
          _
      $region48: #{tpu_custom_call.1} parent=5 // pred_fallthru
        _
    $region6: #{tpu_custom_call.1} parent=1 // loop_footer
      %s18 = sadd.s32 1, %s14
    $region7: #{tpu_custom_call.1} parent=1 // loop_footer_branch
      %13 = sbr.rel target = $region3
    $region8: #{tpu_custom_call.1} parent=1 // loop_exit
      _
    %521 = vsyncpa [#allocation3], 1
    %s522 = scalar_lea.sflag [#allocation3], 1
    %523 = vsyncpa %s522, 1

</llo_original>
